<compile_context>
chip_gen: v7x
topology: tpu7x:2x2x1
jax: 0.10.0
libtpu: 0.0.40
codegen_flags: <defaults>
</compile_context>

<pallas_src>
import jax
import jax.numpy as jnp
from jax.experimental import pallas as pl
from jax.experimental.pallas import tpu as pltpu

LANE = 128      # TPU lane width: fc2 output columns are padded to this.
SUBLANE = 16    # batch-tile granularity (bf16 output packs 16 rows / vreg).


def _round_up(n, m):
    return ((n + m - 1) // m) * m


def _choose_tb(batch, tb_max=2048):
    """Pick the batch-tile size.

    Per-grid-step overhead (~0.35 us) dominates at this problem size, so use
    the biggest tile that comfortably fits VMEM, but keep >= 2 grid steps when
    the batch allows it so the "parallel" batch axis can shard across both
    TensorCores on v7x (1-TC chips are unaffected).
    """
    if batch <= SUBLANE:
        return SUBLANE
    return min(tb_max, _round_up(pl.cdiv(batch, 2), SUBLANE))


def prepare_params(w1, b1, w2, b2):
    """One-time parameter prep (kept out of the per-call hot path).

    fc2 weight is zero-padded to a lane-dense multiple of 128 output columns
    and cast to bf16 (MXU operand); biases become (1, N) rows.
    Returns (w1_f32, b1_row_f32, w2_padded_bf16, b2_padded_row_f32).
    """
    w2 = jnp.asarray(w2, jnp.float32)
    h, a = w2.shape
    a_pad = _round_up(max(a, LANE), LANE)
    w2p = jnp.zeros((h, a_pad), jnp.float32).at[:, :a].set(w2)
    w2p = w2p.astype(jnp.bfloat16)
    b2p = jnp.zeros((1, a_pad), jnp.float32).at[:, :a].set(
        jnp.asarray(b2, jnp.float32).reshape(1, -1))
    w1 = jnp.asarray(w1, jnp.float32)
    b1r = jnp.asarray(b1, jnp.float32).reshape(1, -1)
    return w1, b1r, w2p, b2p


def dqn_ram_kernel(x_ref, w1_ref, b1_ref, w2_ref, b2_ref, o_ref):
    """One (tb, F) batch tile -> (tb, A_pad) bf16 Q-value tile, fully fused."""
    x = x_ref[...]                                   # (tb, F)  f32
    n_feat = x_ref.shape[1]                          # static (4)

    # fc1 + bias: K=4 is too small for a useful MXU pass -- unrolled
    # broadcast multiply-adds on the VPU, in f32.
    h = b1_ref[...] + x[:, 0:1] * w1_ref[0:1, :]     # (tb, H)
    for f in range(1, n_feat):
        h = h + x[:, f:f + 1] * w1_ref[f:f + 1, :]
    h = jnp.maximum(h, 0.0)                          # ReLU (VPU, f32)

    # fc2 on the MXU: bf16 operands, f32 accumulation.  w2_ref is already
    # bf16 and zero-padded to 128 lane-dense output columns.
    y = jnp.dot(h.astype(jnp.bfloat16), w2_ref[...],
                preferred_element_type=jnp.float32)  # (tb, A_pad) f32
    o_ref[...] = (y + b2_ref[...]).astype(o_ref.dtype)   # bf16 writeback


def dqn_ram_forward(x, w1, b1_row, w2p, b2p, *, num_actions, tb=None):
    """relu(x @ w1 + b1) @ w2 + b2 using pre-prepared (padded) fc2 params.

    x:      (B, in_features) f32
    w1:     (in_features, hidden) f32;  b1_row: (1, hidden) f32
    w2p:    (hidden, A_pad) bf16 (lane-dense padded);  b2p: (1, A_pad) f32
    Returns (B, num_actions) f32.
    """
    x = jnp.asarray(x, jnp.float32)
    B, F = x.shape
    H = w1.shape[1]
    A_pad = w2p.shape[1]

    if tb is None:
        tb = _choose_tb(B)
    grid = (pl.cdiv(B, tb),)

    cost = pl.CostEstimate(
        flops=2 * B * F * H + 2 * B * H * num_actions,
        transcendentals=0,
        bytes_accessed=(B * F * 4 + F * H * 4 + H * 4
                        + H * A_pad * 2 + A_pad * 4 + B * A_pad * 2),
    )

    out = pl.pallas_call(
        dqn_ram_kernel,
        out_shape=jax.ShapeDtypeStruct((B, A_pad), jnp.bfloat16),
        grid_spec=pltpu.PrefetchScalarGridSpec(
            num_scalar_prefetch=0,
            grid=grid,
            in_specs=[
                pl.BlockSpec((tb, F), lambda i: (i, 0)),      # x batch tile
                pl.BlockSpec((F, H), lambda i: (0, 0)),       # w1 (resident)
                pl.BlockSpec((1, H), lambda i: (0, 0)),       # b1 (resident)
                pl.BlockSpec((H, A_pad), lambda i: (0, 0)),   # w2 (resident)
                pl.BlockSpec((1, A_pad), lambda i: (0, 0)),   # b2 (resident)
            ],
            out_specs=pl.BlockSpec((tb, A_pad), lambda i: (i, 0)),
        ),
        compiler_params=pltpu.CompilerParams(
            dimension_semantics=("parallel",)),
        cost_estimate=cost,
    )(x, w1, b1_row, w2p, b2p)

    # Single fused slice+cast back to the module's (B, num_actions) f32.
    return out[:, :num_actions].astype(jnp.float32)


def init_params(key, in_features=4, hidden=32, num_actions=18):
    """Deterministic PyTorch-Linear-style init (uniform +/- 1/sqrt(fan_in))."""
    k1, k2, k3, k4 = jax.random.split(key, 4)
    lim1 = 1.0 / jnp.sqrt(jnp.float32(in_features))
    lim2 = 1.0 / jnp.sqrt(jnp.float32(hidden))
    # Stored already transposed to (in, out) for the kernel's x @ W layout.
    w1 = jax.random.uniform(k1, (in_features, hidden), jnp.float32, -lim1, lim1)
    b1 = jax.random.uniform(k2, (hidden,), jnp.float32, -lim1, lim1)
    w2 = jax.random.uniform(k3, (hidden, num_actions), jnp.float32, -lim2, lim2)
    b2 = jax.random.uniform(k4, (num_actions,), jnp.float32, -lim2, lim2)
    return w1, b1, w2, b2


def _reference(x, w1, b1, w2, b2, matched=True):
    h = jnp.maximum(x @ w1 + b1, 0.0)
    if matched:
        y = jnp.dot(h.astype(jnp.bfloat16), w2.astype(jnp.bfloat16),
                    preferred_element_type=jnp.float32) + b2
        return y.astype(jnp.bfloat16).astype(jnp.float32)  # match bf16 writeback
    return h @ w2 + b2


if __name__ == "__main__":
    key = jax.random.PRNGKey(0)
    kx1, kx2, kx3, kp = jax.random.split(key, 4)

    F, H, A = 4, 32, 18
    w1, b1, w2, b2 = init_params(kp, in_features=F, hidden=H, num_actions=A)
    # One-time parameter prep (pad/cast fc2) -- off the per-call hot path.
    w1p, b1r, w2p, b2p = prepare_params(w1, b1, w2, b2)

    # Batch sizes: module-natural tiny batch, a non-multiple-of-tile batch
    # (exercises the masked partial last block), and a larger batched run
    # (exercises the >=2-step "parallel" grid).
    for kx, B in ((kx1, 2), (kx2, 100), (kx3, 512)):
        x = jax.random.normal(kx, (B, F), jnp.float32)
        out = jax.block_until_ready(
            dqn_ram_forward(x, w1p, b1r, w2p, b2p, num_actions=A))
        assert out.shape == (B, A)
        ref_m = _reference(x, w1, b1, w2, b2, matched=True)
        ref_f = _reference(x, w1, b1, w2, b2, matched=False)
        assert jnp.allclose(out, ref_m, atol=2e-2, rtol=2e-2), f"B={B} mismatch"
        assert jnp.allclose(out, ref_f, atol=6e-2, rtol=6e-2), f"B={B} far off"

    print("KERNEL_OK")
</pallas_src>

<mosaic_0001>
module attributes {stable_mosaic.version = 11 : i64} {
  func.func @dqn_ram_kernel(%arg0: i32, %arg1: memref<16x4xf32, #tpu.memory_space<vmem>>, %arg2: memref<4x32xf32, #tpu.memory_space<vmem>>, %arg3: memref<1x32xf32, #tpu.memory_space<vmem>>, %arg4: memref<32x128xbf16, #tpu.memory_space<vmem>>, %arg5: memref<1x128xf32, #tpu.memory_space<vmem>>, %arg6: memref<16x128xbf16, #tpu.memory_space<vmem>>) attributes {dimension_semantics = [#tpu.dimension_semantics<parallel>], iteration_bounds = array<i64: 1>, scalar_prefetch = 0 : i64, scratch_operands = 0 : i64, tpu.core_type = #tpu.core_type<tc>, window_params = [{transform_indices = @transform_0, window_bounds = array<i64: 16, 4>}, {pipeline_mode = #tpu.pipeline_mode<synchronous>, transform_indices = @transform_1, window_bounds = array<i64: 4, 32>}, {pipeline_mode = #tpu.pipeline_mode<synchronous>, transform_indices = @transform_2, window_bounds = array<i64: 1, 32>}, {pipeline_mode = #tpu.pipeline_mode<synchronous>, transform_indices = @transform_3, window_bounds = array<i64: 32, 128>}, {pipeline_mode = #tpu.pipeline_mode<synchronous>, transform_indices = @transform_4, window_bounds = array<i64: 1, 128>}, {transform_indices = @transform_5, window_bounds = array<i64: 16, 128>}]} {
    %c0 = arith.constant 0 : index
    %c0_0 = arith.constant 0 : index
    %0 = vector.load %arg1[%c0, %c0_0] : memref<16x4xf32, #tpu.memory_space<vmem>>, vector<16x4xf32>
    %c0_1 = arith.constant 0 : index
    %c0_2 = arith.constant 0 : index
    %1 = vector.load %arg3[%c0_1, %c0_2] : memref<1x32xf32, #tpu.memory_space<vmem>>, vector<1x32xf32>
    %2 = vector.extract_strided_slice %0 {offsets = [0, 0], sizes = [16, 1], strides = [1, 1]} : vector<16x4xf32> to vector<16x1xf32>
    %c0_3 = arith.constant 0 : index
    %c0_4 = arith.constant 0 : index
    %3 = vector.load %arg2[%c0_3, %c0_4] : memref<4x32xf32, #tpu.memory_space<vmem>>, vector<1x32xf32>
    %4 = vector.broadcast %2 : vector<16x1xf32> to vector<16x32xf32>
    %5 = vector.broadcast %3 : vector<1x32xf32> to vector<16x32xf32>
    %6 = arith.mulf %4, %5 : vector<16x32xf32>
    %7 = vector.broadcast %1 : vector<1x32xf32> to vector<16x32xf32>
    %8 = arith.addf %7, %6 : vector<16x32xf32>
    %9 = vector.extract_strided_slice %0 {offsets = [0, 1], sizes = [16, 1], strides = [1, 1]} : vector<16x4xf32> to vector<16x1xf32>
    %c1 = arith.constant 1 : index
    %c0_5 = arith.constant 0 : index
    %10 = vector.load %arg2[%c1, %c0_5] : memref<4x32xf32, #tpu.memory_space<vmem>>, vector<1x32xf32>
    %11 = vector.broadcast %9 : vector<16x1xf32> to vector<16x32xf32>
    %12 = vector.broadcast %10 : vector<1x32xf32> to vector<16x32xf32>
    %13 = arith.mulf %11, %12 : vector<16x32xf32>
    %14 = arith.addf %8, %13 : vector<16x32xf32>
    %15 = vector.extract_strided_slice %0 {offsets = [0, 2], sizes = [16, 1], strides = [1, 1]} : vector<16x4xf32> to vector<16x1xf32>
    %c2 = arith.constant 2 : index
    %c0_6 = arith.constant 0 : index
    %16 = vector.load %arg2[%c2, %c0_6] : memref<4x32xf32, #tpu.memory_space<vmem>>, vector<1x32xf32>
    %17 = vector.broadcast %15 : vector<16x1xf32> to vector<16x32xf32>
    %18 = vector.broadcast %16 : vector<1x32xf32> to vector<16x32xf32>
    %19 = arith.mulf %17, %18 : vector<16x32xf32>
    %20 = arith.addf %14, %19 : vector<16x32xf32>
    %21 = vector.extract_strided_slice %0 {offsets = [0, 3], sizes = [16, 1], strides = [1, 1]} : vector<16x4xf32> to vector<16x1xf32>
    %c3 = arith.constant 3 : index
    %c0_7 = arith.constant 0 : index
    %22 = vector.load %arg2[%c3, %c0_7] : memref<4x32xf32, #tpu.memory_space<vmem>>, vector<1x32xf32>
    %23 = vector.broadcast %21 : vector<16x1xf32> to vector<16x32xf32>
    %24 = vector.broadcast %22 : vector<1x32xf32> to vector<16x32xf32>
    %25 = arith.mulf %23, %24 : vector<16x32xf32>
    %26 = arith.addf %20, %25 : vector<16x32xf32>
    %cst = arith.constant 0.000000e+00 : f32
    %27 = vector.broadcast %cst : f32 to vector<16x32xf32>
    %28 = arith.maximumf %26, %27 : vector<16x32xf32>
    %29 = arith.truncf %28 : vector<16x32xf32> to vector<16x32xbf16>
    %c0_8 = arith.constant 0 : index
    %c0_9 = arith.constant 0 : index
    %30 = vector.load %arg4[%c0_8, %c0_9] : memref<32x128xbf16, #tpu.memory_space<vmem>>, vector<32x128xbf16>
    %cst_10 = arith.constant dense<0.000000e+00> : vector<16x128xf32>
    %31 = tpu.matmul %29, %30, %cst_10 {dimension_numbers = #tpu.dot_dimension_numbers<[1], [0], [0], [1], [0, 0, 1, 1], [], []>} : vector<16x32xbf16>, vector<32x128xbf16>, vector<16x128xf32> -> vector<16x128xf32>
    %c0_11 = arith.constant 0 : index
    %c0_12 = arith.constant 0 : index
    %32 = vector.load %arg5[%c0_11, %c0_12] : memref<1x128xf32, #tpu.memory_space<vmem>>, vector<1x128xf32>
    %33 = vector.broadcast %32 : vector<1x128xf32> to vector<16x128xf32>
    %34 = arith.addf %31, %33 : vector<16x128xf32>
    %35 = arith.truncf %34 : vector<16x128xf32> to vector<16x128xbf16>
    %c0_13 = arith.constant 0 : index
    %c0_14 = arith.constant 0 : index
    %36 = vector.load %arg6[%c0_13, %c0_14] : memref<16x128xbf16, #tpu.memory_space<vmem>>, vector<16x128xbf16>
    tpu.vector_store %arg6[%c0_13, %c0_14], %35 {strides = array<i32>} : memref<16x128xbf16, #tpu.memory_space<vmem>>, vector<16x128xbf16>,
    return
  }
  func.func @transform_0(%arg0: i32) -> (i32, i32) {
    %c0_i32 = arith.constant 0 : i32
    %c0_i32_0 = arith.constant 0 : i32
    return %arg0, %c0_i32 : i32, i32
  }
  func.func @transform_1(%arg0: i32) -> (i32, i32) {
    %c0_i32 = arith.constant 0 : i32
    %c0_i32_0 = arith.constant 0 : i32
    %c0_i32_1 = arith.constant 0 : i32
    return %c0_i32, %c0_i32_0 : i32, i32
  }
  func.func @transform_2(%arg0: i32) -> (i32, i32) {
    %c0_i32 = arith.constant 0 : i32
    %c0_i32_0 = arith.constant 0 : i32
    %c0_i32_1 = arith.constant 0 : i32
    return %c0_i32, %c0_i32_0 : i32, i32
  }
  func.func @transform_3(%arg0: i32) -> (i32, i32) {
    %c0_i32 = arith.constant 0 : i32
    %c0_i32_0 = arith.constant 0 : i32
    %c0_i32_1 = arith.constant 0 : i32
    return %c0_i32, %c0_i32_0 : i32, i32
  }
  func.func @transform_4(%arg0: i32) -> (i32, i32) {
    %c0_i32 = arith.constant 0 : i32
    %c0_i32_0 = arith.constant 0 : i32
    %c0_i32_1 = arith.constant 0 : i32
    return %c0_i32, %c0_i32_0 : i32, i32
  }
  func.func @transform_5(%arg0: i32) -> (i32, i32) {
    %c0_i32 = arith.constant 0 : i32
    %c0_i32_0 = arith.constant 0 : i32
    return %arg0, %c0_i32 : i32, i32
  }
}

</mosaic_0001>

<llo_original>
// kernel: tpu_custom_call.1
$region0: #{tpu_custom_call.1}
  #allocation0 [shape = 'u32[]', space=smem, size = 0x4, offset = 0x4, fixed_abs, tag = 'smem constant byte address 0x4 - core index']
  #allocation1 [shape = 'u32[144,128]{1,0:T(1,128)}', space=vmem, size = 0x12000, scoped, tag = 'internal scratch']
  %s0 = inlined_call_operand.hbm [shape: f32[2,4], index: 0, kind: input, shape index: {}]
  %s1 = inlined_call_operand.hbm [shape: f32[4,32], index: 1, kind: input, shape index: {}]
  %s2 = inlined_call_operand.vmem [shape: f32[1,32], index: 2, kind: input, shape index: {}]
  %s3 = inlined_call_operand.hbm [shape: bf16[32,128], index: 3, kind: input, shape index: {}]
  %s4 = inlined_call_operand.vmem [shape: f32[1,128], index: 4, kind: input, shape index: {}]
  %s5 = inlined_call_operand.hbm [shape: bf16[2,128], index: 5, kind: output, shape index: {}]
  %s6 = sld [smem:[#allocation0]]
  $region42: #{tpu_custom_call.1} parent=0
    _
  %s8 = ssub.s32 1, %s6
  %s9 = scalar_select 0, %s8, %s6
  $region1: #{tpu_custom_call.1} parent=0
    #allocation2 [shape = 'u8[8192]{0}', space=vmem, size = 0x2000, scoped, tag = 'input window, operand 0, single buffered']
    #allocation3 [shape = 's32[1]{0}', space=sflag, size = 0x4, scoped, tag = 'scoped memory for tpu_custom_call.1']
    #allocation4 [shape = 's32[1]{0}', space=sflag, size = 0x4, scoped, tag = 'scoped memory for tpu_custom_call.1']
    #allocation5 [shape = 'u8[2048]{0}', space=vmem, size = 0x800, scoped, tag = 'input window, operand 1, single buffered']
    #allocation6 [shape = 's32[1]{0}', space=sflag, size = 0x4, scoped, tag = 'scoped memory for tpu_custom_call.1']
    #allocation7 [shape = 'u8[8192]{0}', space=vmem, size = 0x2000, scoped, tag = 'input window, operand 3, single buffered']
    #allocation8 [shape = 'u8[4096]{0}', space=vmem, size = 0x1000, scoped, tag = 'output window, operand 0, single buffered']
    %10 = vsyncpa [#allocation3], 0
    %11 = vsyncpa [#allocation6], 0
    %12 = vsyncpa [#allocation4], 0
    // Predicated region
    $region2: #{tpu_custom_call.1} parent=1 // pred_check
      _
    $region3: #{tpu_custom_call.1} parent=1 // pred_check_branch
      %14 = sbr.rel (0) target = $region5
    $region4: #{tpu_custom_call.1} parent=1 // pred_region
      %s16 = ssub.s32 256, 32
      %17 = vsyncadd [#allocation3], %s16
      %s18 = sshll.u32 [#allocation2], 4
      %s19 = int_to_ptr.vmem [resolvable:$true] %s18
      %24 = dma.hbm_to_vmem [thread:$0]  %s0, 32, %s19, [#allocation3], 32, 32, 2
    $region5: #{tpu_custom_call.1} parent=1 // pred_fallthru
      _
    // Predicated region
    $region6: #{tpu_custom_call.1} parent=1 // pred_check
      _
    $region7: #{tpu_custom_call.1} parent=1 // pred_check_branch
      %26 = sbr.rel (0) target = $region9
    $region8: #{tpu_custom_call.1} parent=1 // pred_region
      %s28 = ssub.s32 64, 64
      %29 = vsyncadd [#allocation6], %s28
      %s31 = sshll.u32 [#allocation5], 4
      %s32 = int_to_ptr.vmem [resolvable:$true] %s31
      %34 = dma.hbm_to_vmem [thread:$0]  %s1, 64, %s32, [#allocation6]
    $region9: #{tpu_custom_call.1} parent=1 // pred_fallthru
      _
    // Predicated region
    $region10: #{tpu_custom_call.1} parent=1 // pred_check
      _
    $region11: #{tpu_custom_call.1} parent=1 // pred_check_branch
      %36 = sbr.rel (0) target = $region13
    $region12: #{tpu_custom_call.1} parent=1 // pred_region
      _
    $region13: #{tpu_custom_call.1} parent=1 // pred_fallthru
      _
    // Predicated region
    $region14: #{tpu_custom_call.1} parent=1 // pred_check
      _
    $region15: #{tpu_custom_call.1} parent=1 // pred_check_branch
      %38 = sbr.rel (0) target = $region17
    $region16: #{tpu_custom_call.1} parent=1 // pred_region
      %s40 = ssub.s32 256, 256
      %41 = vsyncadd [#allocation6], %s40
      %s42 = sshll.u32 [#allocation7], 4
      %s43 = int_to_ptr.vmem [resolvable:$true] %s42
      %48 = dma.hbm_to_vmem [thread:$0]  %s3, 256, %s43, [#allocation6], 64, 64, 4
    $region17: #{tpu_custom_call.1} parent=1 // pred_fallthru
      _
    // Predicated region
    $region18: #{tpu_custom_call.1} parent=1 // pred_check
      _
    $region19: #{tpu_custom_call.1} parent=1 // pred_check_branch
      %50 = sbr.rel (0) target = $region21
    $region20: #{tpu_custom_call.1} parent=1 // pred_region
      _
    $region21: #{tpu_custom_call.1} parent=1 // pred_fallthru
      _
    // Predicated region
    $region22: #{tpu_custom_call.1} parent=1 // pred_check
      _
    $region23: #{tpu_custom_call.1} parent=1 // pred_check_branch
      %52 = sbr.rel (0) target = $region25
    $region24: #{tpu_custom_call.1} parent=1 // pred_region
      %53 = dma.done [#allocation3], 256
    $region25: #{tpu_custom_call.1} parent=1 // pred_fallthru
      _
    // Predicated region
    $region26: #{tpu_custom_call.1} parent=1 // pred_check
      _
    $region27: #{tpu_custom_call.1} parent=1 // pred_check_branch
      %55 = sbr.rel (0) target = $region29
    $region28: #{tpu_custom_call.1} parent=1 // pred_region
      %56 = dma.done [#allocation6], 64
    $region29: #{tpu_custom_call.1} parent=1 // pred_fallthru
      _
    // Predicated region
    $region30: #{tpu_custom_call.1} parent=1 // pred_check
      _
    $region31: #{tpu_custom_call.1} parent=1 // pred_check_branch
      %58 = sbr.rel (0) target = $region33
    $region32: #{tpu_custom_call.1} parent=1 // pred_region
      %59 = dma.done [#allocation6], 256
    $region33: #{tpu_custom_call.1} parent=1 // pred_fallthru
      _
    %v61 = vld [vmem:[#allocation2] sm:$0xff]
    %v62 = vld [vmem:[#allocation2 + $0x8] sm:$0xff]
    %v63 = vld [vmem:[%s2] sm:$0x1]
    %v64 = vld [vmem:[#allocation5] sm:$0x1]
    %66 = vset.pattern.permute.xlu0 0
    %67 = vperm.xlu0 %66, %v61
    %v68 = vpop.permute.xlu0 %67
    %71 = vset.pattern.permute.xlu0 0
    %72 = vperm.xlu0 %71, %v62
    %v73 = vpop.permute.xlu0 %72
    %v75 = vlaneseq
    %v76 = vshrl.u32 %v75, 7
    %v77 = vsub.s32 0, %v76
    %v78 = vrot.slane %v64, %v77
    %v79 = vmul.f32 %v68, %v78
    %v80 = vmul.f32 %v73, %v78
    %v82 = vlaneseq
    %v83 = vshrl.u32 %v82, 7
    %v84 = vsub.s32 0, %v83
    %v85 = vrot.slane %v63, %v84
    %v87 = vadd.f32 %v85, %v79
    %v88 = vadd.f32 %v85, %v80
    %v89 = vld [vmem:[#allocation5 + $0x1] sm:$0x1]
    %90 = vset.pattern.permute.xlu0 1
    %91 = vperm.xlu0 %90, %v61
    %v92 = vpop.permute.xlu0 %91
    %94 = vset.pattern.permute.xlu0 1
    %95 = vperm.xlu0 %94, %v62
    %v96 = vpop.permute.xlu0 %95
    %v98 = vlaneseq
    %v99 = vshrl.u32 %v98, 7
    %v100 = vsub.s32 0, %v99
    %v101 = vrot.slane %v89, %v100
    %v102 = vmul.f32 %v92, %v101
    %v103 = vmul.f32 %v96, %v101
    %v104 = vadd.f32 %v87, %v102
    %v105 = vadd.f32 %v88, %v103
    %v106 = vld [vmem:[#allocation5 + $0x2] sm:$0x1]
    %107 = vset.pattern.permute.xlu0 2
    %108 = vperm.xlu0 %107, %v61
    %v109 = vpop.permute.xlu0 %108
    %111 = vset.pattern.permute.xlu0 2
    %112 = vperm.xlu0 %111, %v62
    %v113 = vpop.permute.xlu0 %112
    %v115 = vlaneseq
    %v116 = vshrl.u32 %v115, 7
    %v117 = vsub.s32 0, %v116
    %v118 = vrot.slane %v106, %v117
    %v119 = vmul.f32 %v109, %v118
    %v120 = vmul.f32 %v113, %v118
    %v121 = vadd.f32 %v104, %v119
    %v122 = vadd.f32 %v105, %v120
    %v123 = vld [vmem:[#allocation5 + $0x3] sm:$0x1]
    %124 = vset.pattern.permute.xlu0 3
    %125 = vperm.xlu0 %124, %v61
    %v126 = vpop.permute.xlu0 %125
    %128 = vset.pattern.permute.xlu0 3
    %129 = vperm.xlu0 %128, %v62
    %v130 = vpop.permute.xlu0 %129
    %v132 = vlaneseq
    %v133 = vshrl.u32 %v132, 7
    %v134 = vsub.s32 0, %v133
    %v135 = vrot.slane %v123, %v134
    %v136 = vmul.f32 %v126, %v135
    %v137 = vmul.f32 %v130, %v135
    %v138 = vadd.f32 %v121, %v136
    %v139 = vadd.f32 %v122, %v137
    %v140 = vmax.f32 %v138, 0.0
    %v141 = vmax.f32 %v139, 0.0
    %v142 = vpack.c.bf16 %v141, %v140
    %v143 = vld [vmem:[#allocation7] sm:$0xf]
    %v144 = vld [vmem:[#allocation7 + $0x4] sm:$0xf]
    %v145 = vld [vmem:[#allocation7 + $0x8] sm:$0xf]
    %v146 = vld [vmem:[#allocation7 + $0xc] sm:$0xf]
    %v147 = vld [vmem:[%s4] sm:$0x1]
    %v149 = vlaneseq
    %v150 = vshrl.u32 %v149, 7
    %v151 = vsub.s32 0, %v150
    %v152 = vrot.slane %v147, %v151
    %v158 = vunpack.c.l.b16 %v143
    %v159 = vunpack.c.l.b16 %v144
    %v160 = vunpack.c.l.b16 %v145
    %v161 = vunpack.c.l.b16 %v146
    %v162 = vpack.c.b16 %v159, %v158
    %v163 = vpack.c.b16 %v161, %v160
    %vm166 = vcmask 261120
    %v168 = vsel %vm166, %v142, 0
    %170 = vmatprep.subr.bf16.mxu0 0
    %171 = vmatpush1.bf16.msra.mxu0 %v162
    %172 = vmatprep.subr.bf16.mxu0 0
    %173 = vmatpush1.bf16.msra.mxu0 %v163
    %174 = vmatprep.subr.bf16.mxu0 0
    %175 = vmatpush1.bf16.msra.mxu0 0
    %176 = vmatprep.subr.bf16.mxu0 0
    %177 = vmatpush1.bf16.msra.mxu0 0
    %178 = vmatprep.subr.bf16.mxu0 0
    %179 = vmatpush1.bf16.msra.mxu0 0
    %180 = vmatprep.subr.bf16.mxu0 0
    %181 = vmatpush1.bf16.msra.mxu0 0
    %182 = vmatprep.subr.bf16.mxu0 0
    %183 = vmatpush1.bf16.msra.mxu0 0
    %184 = vmatprep.subr.bf16.mxu0 0
    %185 = vmatpush1.bf16.msra.mxu0 0
    %186 = vmatprep.subr.bf16.mxu0 0
    %187 = vmatpush1.bf16.msra.mxu0 0
    %188 = vmatprep.subr.bf16.mxu0 0
    %189 = vmatpush1.bf16.msra.mxu0 0
    %190 = vmatprep.subr.bf16.mxu0 0
    %191 = vmatpush1.bf16.msra.mxu0 0
    %192 = vmatprep.subr.bf16.mxu0 0
    %193 = vmatpush1.bf16.msra.mxu0 0
    %194 = vmatprep.subr.bf16.mxu0 0
    %195 = vmatpush1.bf16.msra.mxu0 0
    %196 = vmatprep.subr.bf16.mxu0 0
    %197 = vmatpush1.bf16.msra.mxu0 0
    %198 = vmatprep.subr.bf16.mxu0 0
    %199 = vmatpush1.bf16.msra.mxu0 0
    %200 = vmatprep.subr.bf16.mxu0 0
    %201 = vmatpush1.bf16.msra.mxu0 0
    %202 = vmatprep.mubr.bf16.mxu0 0
    %203 = vmatmul.mubr.bf16.gmra.mrb[0].mxu0 %v168
    %v204 = vpop.f32.mrb[0].mxu0
    %v205 = vadd.f32 %v152, %v204
    %v206 = vpop.f32.mrb[0].mxu0
    %v207 = vpop.f32.mrb[0].mxu0
    %v208 = vadd.f32 %v152, %v207
    %v209 = vpop.f32.mrb[0].mxu0
    %210 = vdwg.mxu0
    %v211 = vpack.c.bf16 %v208, %v205
    %v213 = vcombine.high %v211, %v211
    %v215 = vunpack.c.l.s4 1966171168
    %v216 = vunpack.c.0.s8 %v215
    %v217 = vlaneseq
    %v218 = vshrl.u32 %v217, 7
    %v219 = vsub.s32 %v216, %v218
    %v220 = vrot.slane %v211, %v219
    %v222 = vunpack.c.l.s4 1966171168
    %v223 = vunpack.c.0.s8 %v222
    %v224 = vlaneseq
    %v225 = vshrl.u32 %v224, 7
    %v226 = vsub.s32 %v223, %v225
    %v227 = vrot.slane %v213, %v226
    %v228 = vcombine.high %v220, %v220
    %v229 = vcombine.high %v227, %v227
    %v231 = vunpack.c.l.s4 1966171168
    %v232 = vunpack.c.0.s8 %v231
    %v233 = vlaneseq
    %v234 = vshrl.u32 %v233, 7
    %v235 = vsub.s32 %v232, %v234
    %v236 = vrot.slane %v220, %v235
    %v238 = vunpack.c.l.s4 1966171168
    %v239 = vunpack.c.0.s8 %v238
    %v240 = vlaneseq
    %v241 = vshrl.u32 %v240, 7
    %v242 = vsub.s32 %v239, %v241
    %v243 = vrot.slane %v227, %v242
    %v245 = vunpack.c.l.s4 1966171168
    %v246 = vunpack.c.0.s8 %v245
    %v247 = vlaneseq
    %v248 = vshrl.u32 %v247, 7
    %v249 = vsub.s32 %v246, %v248
    %v250 = vrot.slane %v228, %v249
    %v252 = vunpack.c.l.s4 1966171168
    %v253 = vunpack.c.0.s8 %v252
    %v254 = vlaneseq
    %v255 = vshrl.u32 %v254, 7
    %v256 = vsub.s32 %v253, %v255
    %v257 = vrot.slane %v229, %v256
    %v258 = vcombine.high %v236, %v236
    %v259 = vcombine.high %v243, %v243
    %v260 = vcombine.high %v250, %v250
    %v261 = vcombine.high %v257, %v257
    %270 = vst [vmem:[#allocation8] sm:$0x1] %v236
    %271 = vst [vmem:[#allocation8 + $0x1] sm:$0x1] %v250
    %272 = vst [vmem:[#allocation8 + $0x2] sm:$0x1] %v258
    %273 = vst [vmem:[#allocation8 + $0x3] sm:$0x1] %v260
    %274 = vst [vmem:[#allocation8 + $0x4] sm:$0x1] %v243
    %275 = vst [vmem:[#allocation8 + $0x5] sm:$0x1] %v257
    %276 = vst [vmem:[#allocation8 + $0x6] sm:$0x1] %v259
    %277 = vst [vmem:[#allocation8 + $0x7] sm:$0x1] %v261
    // Predicated region
    $region34: #{tpu_custom_call.1} parent=1 // pred_check
      _
    $region35: #{tpu_custom_call.1} parent=1 // pred_check_branch
      %279 = sbr.rel (0) target = $region37
    $region36: #{tpu_custom_call.1} parent=1 // pred_region
      %s281 = ssub.s32 128, 16
      %282 = vsyncadd [#allocation4], %s281
      %s283 = sshll.u32 [#allocation8], 4
      %s284 = int_to_ptr.vmem [resolvable:$true] %s283
      %289 = dma.vmem_to_hbm [thread:$0]  %s284, 16, %s5, [#allocation4], 16, 16, 1
    $region37: #{tpu_custom_call.1} parent=1 // pred_fallthru
      _
    // Predicated region
    $region38: #{tpu_custom_call.1} parent=1 // pred_check
      _
    $region39: #{tpu_custom_call.1} parent=1 // pred_check_branch
      %291 = sbr.rel (0) target = $region41
    $region40: #{tpu_custom_call.1} parent=1 // pred_region
      %292 = dma.done [#allocation4], 128
    $region41: #{tpu_custom_call.1} parent=1 // pred_fallthru
      _
    %293 = vsyncpa [#allocation3], 1
    %294 = vsyncpa [#allocation6], 1
    %295 = vsyncpa [#allocation4], 1

</llo_original>
